<compile_context>
chip_gen: v5e
topology: v5e:2x2
jax: 0.10.0
libtpu: 0.0.40
codegen_flags: <defaults>
</compile_context>

<pallas_src>
import functools
import math

import jax
import jax.numpy as jnp
from jax import lax
from jax.experimental import pallas as pl
from jax.experimental.pallas import tpu as pltpu


def _round_up(x, m):
    return (x + m - 1) // m * m


def _attention_kernel(x_ref, wqkv_ref, bqkv_ref, wo_ref, bo_ref, o_ref, *,
                      num_heads, key_size, hk_pad):
    """Grid = (batch,). One batch element per step; all heads fused.

    x_ref    : (1, S, Dp) f32   (D zero-padded to Dp lanes)
    wqkv_ref : (Dp, 3*HKp) bf16 pre-transposed [Wq^T | Wk^T | Wv^T], zero-padded
    bqkv_ref : (1, 3*HKp)  f32
    wo_ref   : (HK, Dp)    bf16 (Wo^T, output dim zero-padded)
    bo_ref   : (1, Dp)     f32
    o_ref    : (1, S, Dp)  f32
    """
    H, K, HKp = num_heads, key_size, hk_pad
    S = x_ref.shape[1]
    scale = jnp.float32(1.0 / math.sqrt(float(K)))

    xb = x_ref[0]                                     # (S, Dp) f32, kept for residual
    xb_bf = xb.astype(jnp.bfloat16)                   # cast once per batch step

    # Fused Q/K/V projection for all heads: one wide MXU matmul (N = 3*HKp).
    qkv = (jnp.dot(xb_bf, wqkv_ref[...], preferred_element_type=jnp.float32)
           + bqkv_ref[...])                           # (S, 3*HKp) f32
    q = (qkv[:, 0:HKp] * scale).astype(jnp.bfloat16)  # scale folded into q
    k = qkv[:, HKp:2 * HKp].astype(jnp.bfloat16)
    v = qkv[:, 2 * HKp:3 * HKp].astype(jnp.bfloat16)

    # Causal mask generated in-kernel (iota + compare co-issues under the MXU;
    # nothing resident in VMEM).
    row = lax.broadcasted_iota(jnp.int32, (S, S), 0)
    col = lax.broadcasted_iota(jnp.int32, (S, S), 1)
    mask = jnp.where(col > row, jnp.float32(-1e30), jnp.float32(0.0))

    wo = wo_ref[...]                                  # (HK, Dp) bf16, loaded once

    # Per-head scores / softmax / PV; accumulate each head's contribution to
    # the output projection directly (per-head matmul N = Dp lanes, no concat).
    # TODO(synk): for long sequences add flash-style Q/KV tiling (online
    # softmax) so the per-head (S, S) scores never materialize; for large H
    # replace the unrolled loop with a fori_loop over 128-lane head groups.
    delta = None
    for h in range(H):
        sl = slice(h * K, (h + 1) * K)
        s = lax.dot_general(q[:, sl], k[:, sl],
                            dimension_numbers=(((1,), (1,)), ((), ())),
                            preferred_element_type=jnp.float32)      # (S, S)
        s = s + mask
        m = jnp.max(s, axis=-1, keepdims=True)
        p = jnp.exp(s - m)
        denom = jnp.sum(p, axis=-1, keepdims=True)
        p = p * pl.reciprocal(denom, approx=False)                   # exact softmax
        o_h = jnp.dot(p.astype(jnp.bfloat16), v[:, sl],
                      preferred_element_type=jnp.float32)            # (S, K)
        contrib = jnp.dot(o_h.astype(jnp.bfloat16), wo[sl, :],
                          preferred_element_type=jnp.float32)        # (S, Dp)
        delta = contrib if delta is None else delta + contrib

    # Residual + output bias added once, in f32; lane-dense (Dp>=128) store.
    o_ref[0] = (xb + delta + bo_ref[...]).astype(o_ref.dtype)


def self_attention_forward(x, params, *, num_heads, key_size):
    """x: (B, S, D); params: PyTorch-convention Linear weights/biases."""
    B, S, D = x.shape
    H, K = num_heads, key_size
    HK = H * K
    Dp = _round_up(max(D, 128), 128)     # lane-dense residual / output dim
    HKp = _round_up(max(HK, 128), 128)   # lane-dense q/k/v segments

    x_pad = jnp.pad(x.astype(jnp.float32), ((0, 0), (0, 0), (0, Dp - D)))

    # Pre-transpose / pad / fuse weights once in the wrapper so the kernel
    # never transposes and every matmul is a clean 2-D MXU op.
    def w_in_t(w):   # PyTorch (HK, D) -> (Dp, HKp) = padded W^T
        return jnp.pad(jnp.transpose(w), ((0, Dp - D), (0, HKp - HK)))

    def b_in(b):
        return jnp.pad(b.reshape(1, HK), ((0, 0), (0, HKp - HK)))

    w_qkv = jnp.concatenate(
        [w_in_t(params["wq"]), w_in_t(params["wk"]), w_in_t(params["wv"])],
        axis=1).astype(jnp.bfloat16)                                  # (Dp, 3*HKp)
    b_qkv = jnp.concatenate(
        [b_in(params["bq"]), b_in(params["bk"]), b_in(params["bv"])],
        axis=1).astype(jnp.float32)                                   # (1, 3*HKp)

    wo = jnp.pad(jnp.transpose(params["wo"]),
                 ((0, 0), (0, Dp - D))).astype(jnp.bfloat16)          # (HK, Dp)
    bo = jnp.pad(params["bo"].reshape(1, D),
                 ((0, 0), (0, Dp - D))).astype(jnp.float32)           # (1, Dp)

    # Rough VMEM budget (double-buffered x/out blocks, resident fused weights,
    # activations / per-head score temporaries) with margin, capped from the
    # actual chip VMEM capacity (leaves ~25% headroom for compiler scratch).
    est = (2 * 2 * S * Dp * 4                 # x + out blocks, double-buffered
           + Dp * 3 * HKp * 2 + 3 * HKp * 4   # fused qkv weights / bias (resident)
           + HK * Dp * 2 + Dp * 4             # wo / bo (resident)
           + 4 * S * 3 * HKp * 4              # qkv activation + q/k/v temporaries
           + 2 * S * Dp * 4                   # delta + epilogue temporaries
           + 4 * H * S * S * 4)               # per-head scores / probs
    try:
        vmem_cap = int(pltpu.get_tpu_info().vmem_capacity_bytes)
    except Exception:
        vmem_cap = 64 * 1024 * 1024           # conservative (v7x) fallback
    vmem_limit = int(min(max(4 * est, 8 * 1024 * 1024),
                         vmem_cap - vmem_cap // 4))

    kernel = functools.partial(_attention_kernel,
                               num_heads=H, key_size=K, hk_pad=HKp)

    cp_cls = (getattr(pltpu, "CompilerParams", None)
              or getattr(pltpu, "TPUCompilerParams", None))
    compiler_params = (cp_cls(dimension_semantics=("parallel",),
                              vmem_limit_bytes=vmem_limit)
                       if cp_cls is not None else None)

    # TODO(synk): fold a batch tile Tb into the kernel body (grid (B//Tb,)) to
    # grow the MXU M dim to Tb*S at realistic model sizes; add a q-tiling grid
    # axis (marked "parallel") before targeting long sequences on v7x.
    out = pl.pallas_call(
        kernel,
        out_shape=jax.ShapeDtypeStruct((B, S, Dp), jnp.float32),
        grid=(B,),
        in_specs=[
            pl.BlockSpec((1, S, Dp), lambda b: (b, 0, 0)),       # x (per batch)
            pl.BlockSpec((Dp, 3 * HKp), lambda b: (0, 0)),       # fused qkv weights
            pl.BlockSpec((1, 3 * HKp), lambda b: (0, 0)),        # fused qkv bias
            pl.BlockSpec((HK, Dp), lambda b: (0, 0)),            # wo^T
            pl.BlockSpec((1, Dp), lambda b: (0, 0)),             # bo
        ],
        out_specs=pl.BlockSpec((1, S, Dp), lambda b: (b, 0, 0)),
        compiler_params=compiler_params,
    )(x_pad, w_qkv, b_qkv, wo, bo)

    return out[..., :D].astype(x.dtype)


def reference_forward(x, params, *, num_heads, key_size):
    """Pure-JAX f32 reference matching the PyTorch module."""
    B, S, D = x.shape
    H, K = num_heads, key_size
    x32 = x.astype(jnp.float32)

    def lin(a, w, b):
        return a @ w.T + b

    q = lin(x32, params["wq"], params["bq"]).reshape(B, S, H, K).transpose(0, 2, 1, 3)
    k = lin(x32, params["wk"], params["bk"]).reshape(B, S, H, K).transpose(0, 2, 1, 3)
    v = lin(x32, params["wv"], params["bv"]).reshape(B, S, H, K).transpose(0, 2, 1, 3)
    s = jnp.einsum("bhqk,bhtk->bhqt", q, k) / jnp.sqrt(jnp.float32(K))
    causal = jnp.triu(jnp.ones((S, S), dtype=bool), k=1)
    s = jnp.where(causal, -jnp.inf, s)
    p = jax.nn.softmax(s, axis=-1)
    o = jnp.einsum("bhqt,bhtk->bhqk", p, v).transpose(0, 2, 1, 3).reshape(B, S, H * K)
    out = x32 + lin(o, params["wo"], params["bo"])
    return out.astype(x.dtype)


def init_params(key, residual_stream_dim, num_heads, key_size):
    """nn.Linear defaults (uniform +/- 1/sqrt(fan_in)); o_proj zero-initialized
    per the module's __init__."""
    D = residual_stream_dim
    HK = num_heads * key_size
    ks = jax.random.split(key, 6)
    bound_in = 1.0 / math.sqrt(D)
    return {
        "wq": jax.random.uniform(ks[0], (HK, D), jnp.float32, -bound_in, bound_in),
        "bq": jax.random.uniform(ks[1], (HK,), jnp.float32, -bound_in, bound_in),
        "wk": jax.random.uniform(ks[2], (HK, D), jnp.float32, -bound_in, bound_in),
        "bk": jax.random.uniform(ks[3], (HK,), jnp.float32, -bound_in, bound_in),
        "wv": jax.random.uniform(ks[4], (HK, D), jnp.float32, -bound_in, bound_in),
        "bv": jax.random.uniform(ks[5], (HK,), jnp.float32, -bound_in, bound_in),
        "wo": jnp.zeros((D, HK), jnp.float32),   # nn.init.constant_(0)
        "bo": jnp.zeros((D,), jnp.float32),      # nn.init.constant_(0)
    }


if __name__ == "__main__":
    # Small shapes consistent with the module's forward: (batch, seq, residual_dim)
    batch, seq_len = 2, 8
    residual_stream_dim, num_heads, key_size = 32, 4, 8

    key = jax.random.PRNGKey(0)
    kx, kp, kwo, kbo = jax.random.split(key, 4)
    x = jax.random.normal(kx, (batch, seq_len, residual_stream_dim), jnp.float32)
    params = init_params(kp, residual_stream_dim, num_heads, key_size)

    # 1) Module-faithful init (zero o_proj): output must equal input.
    out = self_attention_forward(x, params, num_heads=num_heads, key_size=key_size)
    out = jax.block_until_ready(out)
    assert out.shape == x.shape and out.dtype == x.dtype
    assert jnp.allclose(out, x, atol=1e-5), "zero o_proj: output should equal input"

    # 2) Exercise the full attention path with a non-zero o_proj and compare to
    #    a pure-JAX f32 reference (bf16 MXU operands -> loose tolerance).
    bound_o = 1.0 / math.sqrt(num_heads * key_size)
    params_nz = dict(params)
    params_nz["wo"] = jax.random.uniform(
        kwo, (residual_stream_dim, num_heads * key_size), jnp.float32, -bound_o, bound_o)
    params_nz["bo"] = jax.random.uniform(
        kbo, (residual_stream_dim,), jnp.float32, -bound_o, bound_o)

    out_nz = jax.block_until_ready(
        self_attention_forward(x, params_nz, num_heads=num_heads, key_size=key_size))
    ref_nz = reference_forward(x, params_nz, num_heads=num_heads, key_size=key_size)
    assert jnp.allclose(out_nz, ref_nz, atol=5e-2, rtol=0.0), "mismatch vs f32 reference"

    print("KERNEL_OK")
</pallas_src>

<mosaic_0001>
module attributes {stable_mosaic.version = 11 : i64} {
  func.func @_attention_kernel(%arg0: i32, %arg1: memref<1x8x128xf32, #tpu.memory_space<vmem>>, %arg2: memref<128x384xbf16, #tpu.memory_space<vmem>>, %arg3: memref<1x384xf32, #tpu.memory_space<vmem>>, %arg4: memref<32x128xbf16, #tpu.memory_space<vmem>>, %arg5: memref<1x128xf32, #tpu.memory_space<vmem>>, %arg6: memref<1x8x128xf32, #tpu.memory_space<vmem>>) attributes {dimension_semantics = [#tpu.dimension_semantics<parallel>], iteration_bounds = array<i64: 2>, scalar_prefetch = 0 : i64, scratch_operands = 0 : i64, tpu.core_type = #tpu.core_type<tc>, window_params = [{transform_indices = @transform_0, window_bounds = array<i64: 1, 8, 128>}, {pipeline_mode = #tpu.pipeline_mode<synchronous>, transform_indices = @transform_1, window_bounds = array<i64: 128, 384>}, {pipeline_mode = #tpu.pipeline_mode<synchronous>, transform_indices = @transform_2, window_bounds = array<i64: 1, 384>}, {pipeline_mode = #tpu.pipeline_mode<synchronous>, transform_indices = @transform_3, window_bounds = array<i64: 32, 128>}, {pipeline_mode = #tpu.pipeline_mode<synchronous>, transform_indices = @transform_4, window_bounds = array<i64: 1, 128>}, {transform_indices = @transform_5, window_bounds = array<i64: 1, 8, 128>}]} {
    %c0 = arith.constant 0 : index
    %c0_0 = arith.constant 0 : index
    %c0_1 = arith.constant 0 : index
    %0 = vector.load %arg1[%c0, %c0_0, %c0_1] : memref<1x8x128xf32, #tpu.memory_space<vmem>>, vector<1x8x128xf32>
    %1 = vector.shape_cast %0 : vector<1x8x128xf32> to vector<8x128xf32>
    %2 = arith.truncf %1 : vector<8x128xf32> to vector<8x128xbf16>
    %c0_2 = arith.constant 0 : index
    %c0_3 = arith.constant 0 : index
    %3 = vector.load %arg2[%c0_2, %c0_3] : memref<128x384xbf16, #tpu.memory_space<vmem>>, vector<128x384xbf16>
    %cst = arith.constant dense<0.000000e+00> : vector<8x384xf32>
    %4 = tpu.matmul %2, %3, %cst {dimension_numbers = #tpu.dot_dimension_numbers<[1], [0], [0], [1], [0, 0, 1, 1], [], []>} : vector<8x128xbf16>, vector<128x384xbf16>, vector<8x384xf32> -> vector<8x384xf32>
    %c0_4 = arith.constant 0 : index
    %c0_5 = arith.constant 0 : index
    %5 = vector.load %arg3[%c0_4, %c0_5] : memref<1x384xf32, #tpu.memory_space<vmem>>, vector<1x384xf32>
    %6 = vector.broadcast %5 : vector<1x384xf32> to vector<8x384xf32>
    %7 = arith.addf %4, %6 : vector<8x384xf32>
    %8 = vector.extract_strided_slice %7 {offsets = [0, 0], sizes = [8, 128], strides = [1, 1]} : vector<8x384xf32> to vector<8x128xf32>
    %cst_6 = arith.constant 0.353553385 : f32
    %9 = vector.broadcast %cst_6 : f32 to vector<8x128xf32>
    %10 = arith.mulf %8, %9 : vector<8x128xf32>
    %11 = arith.truncf %10 : vector<8x128xf32> to vector<8x128xbf16>
    %12 = vector.extract_strided_slice %7 {offsets = [0, 128], sizes = [8, 128], strides = [1, 1]} : vector<8x384xf32> to vector<8x128xf32>
    %13 = arith.truncf %12 : vector<8x128xf32> to vector<8x128xbf16>
    %14 = vector.extract_strided_slice %7 {offsets = [0, 256], sizes = [8, 128], strides = [1, 1]} : vector<8x384xf32> to vector<8x128xf32>
    %15 = arith.truncf %14 : vector<8x128xf32> to vector<8x128xbf16>
    %16 = tpu.iota {dimensions = array<i32: 0>} : vector<8x8xi32>
    %17 = tpu.iota {dimensions = array<i32: 1>} : vector<8x8xi32>
    %18 = arith.cmpi sgt, %17, %16 : vector<8x8xi32>
    %cst_7 = arith.constant -1.000000e+30 : f32
    %cst_8 = arith.constant 0.000000e+00 : f32
    %19 = vector.broadcast %cst_7 : f32 to vector<8x8xf32>
    %20 = vector.broadcast %cst_8 : f32 to vector<8x8xf32>
    %21 = arith.select %18, %19, %20 : vector<8x8xi1>, vector<8x8xf32>
    %c0_9 = arith.constant 0 : index
    %c0_10 = arith.constant 0 : index
    %22 = vector.load %arg4[%c0_9, %c0_10] : memref<32x128xbf16, #tpu.memory_space<vmem>>, vector<32x128xbf16>
    %23 = vector.extract_strided_slice %11 {offsets = [0, 0], sizes = [8, 8], strides = [1, 1]} : vector<8x128xbf16> to vector<8x8xbf16>
    %24 = vector.extract_strided_slice %13 {offsets = [0, 0], sizes = [8, 8], strides = [1, 1]} : vector<8x128xbf16> to vector<8x8xbf16>
    %cst_11 = arith.constant dense<0.000000e+00> : vector<8x8xf32>
    %25 = tpu.matmul %23, %24, %cst_11 {dimension_numbers = #tpu.dot_dimension_numbers<[1], [1], [0], [0], [0, 0, 1, 0], [], []>} : vector<8x8xbf16>, vector<8x8xbf16>, vector<8x8xf32> -> vector<8x8xf32>
    %26 = arith.addf %25, %21 : vector<8x8xf32>
    %cst_12 = arith.constant dense<0xFF800000> : vector<8xf32>
    %27 = vector.multi_reduction <maximumf>, %26, %cst_12 [1] : vector<8x8xf32> to vector<8xf32>
    %28 = vector.shape_cast %27 : vector<8xf32> to vector<8x1xf32>
    %29 = vector.broadcast %28 : vector<8x1xf32> to vector<8x8xf32>
    %30 = arith.subf %26, %29 : vector<8x8xf32>
    %31 = math.exp %30 : vector<8x8xf32>
    %cst_13 = arith.constant dense<0.000000e+00> : vector<8xf32>
    %32 = vector.multi_reduction <add>, %31, %cst_13 [1] : vector<8x8xf32> to vector<8xf32>
    %33 = vector.shape_cast %32 : vector<8xf32> to vector<8x1xf32>
    %34 = tpu.reciprocal %33 : vector<8x1xf32> -> vector<8x1xf32>
    %35 = vector.broadcast %34 : vector<8x1xf32> to vector<8x8xf32>
    %36 = arith.mulf %31, %35 : vector<8x8xf32>
    %37 = arith.truncf %36 : vector<8x8xf32> to vector<8x8xbf16>
    %38 = vector.extract_strided_slice %15 {offsets = [0, 0], sizes = [8, 8], strides = [1, 1]} : vector<8x128xbf16> to vector<8x8xbf16>
    %cst_14 = arith.constant dense<0.000000e+00> : vector<8x8xf32>
    %39 = tpu.matmul %37, %38, %cst_14 {dimension_numbers = #tpu.dot_dimension_numbers<[1], [0], [0], [1], [0, 0, 1, 1], [], []>} : vector<8x8xbf16>, vector<8x8xbf16>, vector<8x8xf32> -> vector<8x8xf32>
    %40 = arith.truncf %39 : vector<8x8xf32> to vector<8x8xbf16>
    %41 = vector.extract_strided_slice %22 {offsets = [0, 0], sizes = [8, 128], strides = [1, 1]} : vector<32x128xbf16> to vector<8x128xbf16>
    %cst_15 = arith.constant dense<0.000000e+00> : vector<8x128xf32>
    %42 = tpu.matmul %40, %41, %cst_15 {dimension_numbers = #tpu.dot_dimension_numbers<[1], [0], [0], [1], [0, 0, 1, 1], [], []>} : vector<8x8xbf16>, vector<8x128xbf16>, vector<8x128xf32> -> vector<8x128xf32>
    %43 = vector.extract_strided_slice %11 {offsets = [0, 8], sizes = [8, 8], strides = [1, 1]} : vector<8x128xbf16> to vector<8x8xbf16>
    %44 = vector.extract_strided_slice %13 {offsets = [0, 8], sizes = [8, 8], strides = [1, 1]} : vector<8x128xbf16> to vector<8x8xbf16>
    %cst_16 = arith.constant dense<0.000000e+00> : vector<8x8xf32>
    %45 = tpu.matmul %43, %44, %cst_16 {dimension_numbers = #tpu.dot_dimension_numbers<[1], [1], [0], [0], [0, 0, 1, 0], [], []>} : vector<8x8xbf16>, vector<8x8xbf16>, vector<8x8xf32> -> vector<8x8xf32>
    %46 = arith.addf %45, %21 : vector<8x8xf32>
    %cst_17 = arith.constant dense<0xFF800000> : vector<8xf32>
    %47 = vector.multi_reduction <maximumf>, %46, %cst_17 [1] : vector<8x8xf32> to vector<8xf32>
    %48 = vector.shape_cast %47 : vector<8xf32> to vector<8x1xf32>
    %49 = vector.broadcast %48 : vector<8x1xf32> to vector<8x8xf32>
    %50 = arith.subf %46, %49 : vector<8x8xf32>
    %51 = math.exp %50 : vector<8x8xf32>
    %cst_18 = arith.constant dense<0.000000e+00> : vector<8xf32>
    %52 = vector.multi_reduction <add>, %51, %cst_18 [1] : vector<8x8xf32> to vector<8xf32>
    %53 = vector.shape_cast %52 : vector<8xf32> to vector<8x1xf32>
    %54 = tpu.reciprocal %53 : vector<8x1xf32> -> vector<8x1xf32>
    %55 = vector.broadcast %54 : vector<8x1xf32> to vector<8x8xf32>
    %56 = arith.mulf %51, %55 : vector<8x8xf32>
    %57 = arith.truncf %56 : vector<8x8xf32> to vector<8x8xbf16>
    %58 = vector.extract_strided_slice %15 {offsets = [0, 8], sizes = [8, 8], strides = [1, 1]} : vector<8x128xbf16> to vector<8x8xbf16>
    %cst_19 = arith.constant dense<0.000000e+00> : vector<8x8xf32>
    %59 = tpu.matmul %57, %58, %cst_19 {dimension_numbers = #tpu.dot_dimension_numbers<[1], [0], [0], [1], [0, 0, 1, 1], [], []>} : vector<8x8xbf16>, vector<8x8xbf16>, vector<8x8xf32> -> vector<8x8xf32>
    %60 = arith.truncf %59 : vector<8x8xf32> to vector<8x8xbf16>
    %61 = vector.extract_strided_slice %22 {offsets = [8, 0], sizes = [8, 128], strides = [1, 1]} : vector<32x128xbf16> to vector<8x128xbf16>
    %cst_20 = arith.constant dense<0.000000e+00> : vector<8x128xf32>
    %62 = tpu.matmul %60, %61, %cst_20 {dimension_numbers = #tpu.dot_dimension_numbers<[1], [0], [0], [1], [0, 0, 1, 1], [], []>} : vector<8x8xbf16>, vector<8x128xbf16>, vector<8x128xf32> -> vector<8x128xf32>
    %63 = arith.addf %42, %62 : vector<8x128xf32>
    %64 = vector.extract_strided_slice %11 {offsets = [0, 16], sizes = [8, 8], strides = [1, 1]} : vector<8x128xbf16> to vector<8x8xbf16>
    %65 = vector.extract_strided_slice %13 {offsets = [0, 16], sizes = [8, 8], strides = [1, 1]} : vector<8x128xbf16> to vector<8x8xbf16>
    %cst_21 = arith.constant dense<0.000000e+00> : vector<8x8xf32>
    %66 = tpu.matmul %64, %65, %cst_21 {dimension_numbers = #tpu.dot_dimension_numbers<[1], [1], [0], [0], [0, 0, 1, 0], [], []>} : vector<8x8xbf16>, vector<8x8xbf16>, vector<8x8xf32> -> vector<8x8xf32>
    %67 = arith.addf %66, %21 : vector<8x8xf32>
    %cst_22 = arith.constant dense<0xFF800000> : vector<8xf32>
    %68 = vector.multi_reduction <maximumf>, %67, %cst_22 [1] : vector<8x8xf32> to vector<8xf32>
    %69 = vector.shape_cast %68 : vector<8xf32> to vector<8x1xf32>
    %70 = vector.broadcast %69 : vector<8x1xf32> to vector<8x8xf32>
    %71 = arith.subf %67, %70 : vector<8x8xf32>
    %72 = math.exp %71 : vector<8x8xf32>
    %cst_23 = arith.constant dense<0.000000e+00> : vector<8xf32>
    %73 = vector.multi_reduction <add>, %72, %cst_23 [1] : vector<8x8xf32> to vector<8xf32>
    %74 = vector.shape_cast %73 : vector<8xf32> to vector<8x1xf32>
    %75 = tpu.reciprocal %74 : vector<8x1xf32> -> vector<8x1xf32>
    %76 = vector.broadcast %75 : vector<8x1xf32> to vector<8x8xf32>
    %77 = arith.mulf %72, %76 : vector<8x8xf32>
    %78 = arith.truncf %77 : vector<8x8xf32> to vector<8x8xbf16>
    %79 = vector.extract_strided_slice %15 {offsets = [0, 16], sizes = [8, 8], strides = [1, 1]} : vector<8x128xbf16> to vector<8x8xbf16>
    %cst_24 = arith.constant dense<0.000000e+00> : vector<8x8xf32>
    %80 = tpu.matmul %78, %79, %cst_24 {dimension_numbers = #tpu.dot_dimension_numbers<[1], [0], [0], [1], [0, 0, 1, 1], [], []>} : vector<8x8xbf16>, vector<8x8xbf16>, vector<8x8xf32> -> vector<8x8xf32>
    %81 = arith.truncf %80 : vector<8x8xf32> to vector<8x8xbf16>
    %82 = vector.extract_strided_slice %22 {offsets = [16, 0], sizes = [8, 128], strides = [1, 1]} : vector<32x128xbf16> to vector<8x128xbf16>
    %cst_25 = arith.constant dense<0.000000e+00> : vector<8x128xf32>
    %83 = tpu.matmul %81, %82, %cst_25 {dimension_numbers = #tpu.dot_dimension_numbers<[1], [0], [0], [1], [0, 0, 1, 1], [], []>} : vector<8x8xbf16>, vector<8x128xbf16>, vector<8x128xf32> -> vector<8x128xf32>
    %84 = arith.addf %63, %83 : vector<8x128xf32>
    %85 = vector.extract_strided_slice %11 {offsets = [0, 24], sizes = [8, 8], strides = [1, 1]} : vector<8x128xbf16> to vector<8x8xbf16>
    %86 = vector.extract_strided_slice %13 {offsets = [0, 24], sizes = [8, 8], strides = [1, 1]} : vector<8x128xbf16> to vector<8x8xbf16>
    %cst_26 = arith.constant dense<0.000000e+00> : vector<8x8xf32>
    %87 = tpu.matmul %85, %86, %cst_26 {dimension_numbers = #tpu.dot_dimension_numbers<[1], [1], [0], [0], [0, 0, 1, 0], [], []>} : vector<8x8xbf16>, vector<8x8xbf16>, vector<8x8xf32> -> vector<8x8xf32>
    %88 = arith.addf %87, %21 : vector<8x8xf32>
    %cst_27 = arith.constant dense<0xFF800000> : vector<8xf32>
    %89 = vector.multi_reduction <maximumf>, %88, %cst_27 [1] : vector<8x8xf32> to vector<8xf32>
    %90 = vector.shape_cast %89 : vector<8xf32> to vector<8x1xf32>
    %91 = vector.broadcast %90 : vector<8x1xf32> to vector<8x8xf32>
    %92 = arith.subf %88, %91 : vector<8x8xf32>
    %93 = math.exp %92 : vector<8x8xf32>
    %cst_28 = arith.constant dense<0.000000e+00> : vector<8xf32>
    %94 = vector.multi_reduction <add>, %93, %cst_28 [1] : vector<8x8xf32> to vector<8xf32>
    %95 = vector.shape_cast %94 : vector<8xf32> to vector<8x1xf32>
    %96 = tpu.reciprocal %95 : vector<8x1xf32> -> vector<8x1xf32>
    %97 = vector.broadcast %96 : vector<8x1xf32> to vector<8x8xf32>
    %98 = arith.mulf %93, %97 : vector<8x8xf32>
    %99 = arith.truncf %98 : vector<8x8xf32> to vector<8x8xbf16>
    %100 = vector.extract_strided_slice %15 {offsets = [0, 24], sizes = [8, 8], strides = [1, 1]} : vector<8x128xbf16> to vector<8x8xbf16>
    %cst_29 = arith.constant dense<0.000000e+00> : vector<8x8xf32>
    %101 = tpu.matmul %99, %100, %cst_29 {dimension_numbers = #tpu.dot_dimension_numbers<[1], [0], [0], [1], [0, 0, 1, 1], [], []>} : vector<8x8xbf16>, vector<8x8xbf16>, vector<8x8xf32> -> vector<8x8xf32>
    %102 = arith.truncf %101 : vector<8x8xf32> to vector<8x8xbf16>
    %103 = vector.extract_strided_slice %22 {offsets = [24, 0], sizes = [8, 128], strides = [1, 1]} : vector<32x128xbf16> to vector<8x128xbf16>
    %cst_30 = arith.constant dense<0.000000e+00> : vector<8x128xf32>
    %104 = tpu.matmul %102, %103, %cst_30 {dimension_numbers = #tpu.dot_dimension_numbers<[1], [0], [0], [1], [0, 0, 1, 1], [], []>} : vector<8x8xbf16>, vector<8x128xbf16>, vector<8x128xf32> -> vector<8x128xf32>
    %105 = arith.addf %84, %104 : vector<8x128xf32>
    %106 = arith.addf %1, %105 : vector<8x128xf32>
    %c0_31 = arith.constant 0 : index
    %c0_32 = arith.constant 0 : index
    %107 = vector.load %arg5[%c0_31, %c0_32] : memref<1x128xf32, #tpu.memory_space<vmem>>, vector<1x128xf32>
    %108 = vector.broadcast %107 : vector<1x128xf32> to vector<8x128xf32>
    %109 = arith.addf %106, %108 : vector<8x128xf32>
    %c0_33 = arith.constant 0 : index
    %c0_34 = arith.constant 0 : index
    %c0_35 = arith.constant 0 : index
    %110 = vector.load %arg6[%c0_33, %c0_34, %c0_35] : memref<1x8x128xf32, #tpu.memory_space<vmem>>, vector<1x8x128xf32>
    %111 = vector.shape_cast %110 : vector<1x8x128xf32> to vector<8x128xf32>
    %112 = vector.shape_cast %109 : vector<8x128xf32> to vector<1x8x128xf32>
    tpu.vector_store %arg6[%c0_33, %c0_34, %c0_35], %112 {strides = array<i32>} : memref<1x8x128xf32, #tpu.memory_space<vmem>>, vector<1x8x128xf32>,
    return
  }
  func.func @transform_0(%arg0: i32) -> (i32, i32, i32) {
    %c0_i32 = arith.constant 0 : i32
    %c0_i32_0 = arith.constant 0 : i32
    %c0_i32_1 = arith.constant 0 : i32
    return %arg0, %c0_i32, %c0_i32_0 : i32, i32, i32
  }
  func.func @transform_1(%arg0: i32) -> (i32, i32) {
    %c0_i32 = arith.constant 0 : i32
    %c0_i32_0 = arith.constant 0 : i32
    %c0_i32_1 = arith.constant 0 : i32
    return %c0_i32, %c0_i32_0 : i32, i32
  }
  func.func @transform_2(%arg0: i32) -> (i32, i32) {
    %c0_i32 = arith.constant 0 : i32
    %c0_i32_0 = arith.constant 0 : i32
    %c0_i32_1 = arith.constant 0 : i32
    return %c0_i32, %c0_i32_0 : i32, i32
  }
  func.func @transform_3(%arg0: i32) -> (i32, i32) {
    %c0_i32 = arith.constant 0 : i32
    %c0_i32_0 = arith.constant 0 : i32
    %c0_i32_1 = arith.constant 0 : i32
    return %c0_i32, %c0_i32_0 : i32, i32
  }
  func.func @transform_4(%arg0: i32) -> (i32, i32) {
    %c0_i32 = arith.constant 0 : i32
    %c0_i32_0 = arith.constant 0 : i32
    %c0_i32_1 = arith.constant 0 : i32
    return %c0_i32, %c0_i32_0 : i32, i32
  }
  func.func @transform_5(%arg0: i32) -> (i32, i32, i32) {
    %c0_i32 = arith.constant 0 : i32
    %c0_i32_0 = arith.constant 0 : i32
    %c0_i32_1 = arith.constant 0 : i32
    return %arg0, %c0_i32, %c0_i32_0 : i32, i32, i32
  }
}

</mosaic_0001>

<llo_original>
// kernel: tpu_custom_call.1
$region0: #{tpu_custom_call.1}
  #allocation0 [shape = 'u32[]', space=smem, size = 0x4, offset = 0x4, fixed_abs, tag = 'smem constant byte address 0x4 - core index']
  #allocation1 [shape = 'u32[72,128]{1,0:T(1,128)}', space=vmem, size = 0x9000, scoped, tag = 'internal scratch']
  %s0 = inlined_call_operand.hbm [shape: f32[2,8,128], index: 0, kind: input, shape index: {}]
  %s1 = inlined_call_operand.hbm [shape: bf16[128,384], index: 1, kind: input, shape index: {}]
  %s2 = inlined_call_operand.hbm [shape: f32[1,384], index: 2, kind: input, shape index: {}]
  %s3 = inlined_call_operand.hbm [shape: bf16[32,128], index: 3, kind: input, shape index: {}]
  %s4 = inlined_call_operand.vmem [shape: f32[1,128], index: 4, kind: input, shape index: {}]
  %s5 = inlined_call_operand.hbm [shape: f32[2,8,128], index: 5, kind: output, shape index: {}]
  %s6 = sld [smem:[#allocation0]]
  $region69: #{tpu_custom_call.1} parent=0
    _
  %s8 = ssub.s32 1, %s6
  %s9 = scalar_select 0, %s8, %s6
  $region1: #{tpu_custom_call.1} parent=0
    #allocation2 [shape = 'u8[8192]{0}', space=vmem, size = 0x2000, scoped, tag = 'input window, operand 0']
    #allocation3 [shape = 's32[2]{0}', space=sflag, size = 0x8, scoped, tag = 'scoped memory for tpu_custom_call.1']
    #allocation4 [shape = 's32[2]{0}', space=sflag, size = 0x8, scoped, tag = 'scoped memory for tpu_custom_call.1']
    #allocation5 [shape = 'u8[98304]{0}', space=vmem, size = 0x18000, scoped, tag = 'input window, operand 1, single buffered']
    #allocation6 [shape = 's32[1]{0}', space=sflag, size = 0x4, scoped, tag = 'scoped memory for tpu_custom_call.1']
    #allocation7 [shape = 'u8[1536]{0}', space=vmem, size = 0x800, scoped, tag = 'input window, operand 2, single buffered']
    #allocation8 [shape = 'u8[8192]{0}', space=vmem, size = 0x2000, scoped, tag = 'input window, operand 3, single buffered']
    #allocation9 [shape = 's32[1]{0}', space=sflag, size = 0x4, scoped, tag = 'scoped memory for tpu_custom_call.1']
    #allocation10 [shape = 'u8[8192]{0}', space=vmem, size = 0x2000, scoped, tag = 'output window, operand 0']
    %10 = vsyncpa [#allocation3], 0
    %s11 = scalar_lea.sflag [#allocation3], 1
    %12 = vsyncpa %s11, 0
    %13 = vsyncpa [#allocation6], 0
    %14 = vsyncpa [#allocation9], 0
    %15 = vsyncpa [#allocation4], 0
    %s16 = scalar_lea.sflag [#allocation4], 1
    %17 = vsyncpa %s16, 0
    loop: start=0, step=1, limit=4
    $region2: #{tpu_custom_call.1} parent=1 // loop_pre_header
      _
    $region3: #{tpu_custom_call.1} parent=1 // loop_header
      %s19 = sphi 0, %s23
      %p20 = scmp.ge.s32.totalorder %s19, 4
      %s29 = sphi 0, %s31
      %s32 = sphi 0, %s29
      %s33 = sphi 0, %s32
      %s49 = sphi 0, %s33
      %s53 = sphi 0, %s53
      %s55 = sphi 0, %s53
      %s56 = sphi 0, %s55
      %s70 = sphi 0, %s56
      %s74 = sphi 0, %s74
      %s76 = sphi 0, %s74
      %s77 = sphi 0, %s76
      %s91 = sphi 0, %s77
      %s95 = sphi 0, %s95
      %s97 = sphi 0, %s95
      %s98 = sphi 0, %s97
      %s112 = sphi 0, %s98
      %s116 = sphi 0, %s116
      %s118 = sphi 0, %s116
      %s119 = sphi 0, %s118
      %s133 = sphi 0, %s119
      %s139 = sphi 0, %s141
      %s142 = sphi 0, %s139
      %s143 = sphi 0, %s142
      %s159 = sphi 0, %s143
    $region4: #{tpu_custom_call.1} parent=1 // loop_header_branch
      %22 = sbr.rel (%p20) target = $region8
    $region5: #{tpu_custom_call.1} parent=1 // loop_body
      %s24 = ssub.s32 %s19, 1
      %s25 = ssub.s32 %s19, 2
      %s26 = sadd.s32 %s19, 1
      %s27 = ssub.s32 %s19, %s26
      %p28 = scmp.eq.s32.totalorder %s27, 0
      %s30 = sadd.s32 %s29, 1
      %s31 = scalar_select %p28, %s29, %s30
      %p34 = pneg %p28
      %p35 = scmp.eq.s32.totalorder %s19, 1
      %p36 = por %p34, %p35
      %p37 = scmp.ne.s32.totalorder %s29, %s32
      %p38 = scmp.eq.s32.totalorder %s19, 0
      %p39 = por %p37, %p38
      %p40 = scmp.ne.s32.totalorder %s29, %s32
      %p41 = scmp.eq.s32.totalorder %s24, 1
      %p42 = por %p40, %p41
      %p43 = scmp.ne.s32.totalorder %s32, %s33
      %p44 = scmp.eq.s32.totalorder %s24, 0
      %p45 = por %p43, %p44
      %p46 = scmp.ne.s32.totalorder %s32, %s33
      %p47 = scmp.eq.s32.totalorder %s25, 1
      %p48 = por %p46, %p47
      %p50 = scmp.ne.s32.totalorder %s33, %s49
      %p51 = scmp.eq.s32.totalorder %s25, 0
      %p52 = por %p50, %p51
      %s54 = sadd.s32 %s53, 1
      %p57 = scmp.eq.s32.totalorder %s19, 1
      %p58 = scmp.ne.s32.totalorder %s53, %s55
      %p59 = scmp.eq.s32.totalorder %s19, 0
      %p60 = por %p58, %p59
      %p61 = scmp.ne.s32.totalorder %s53, %s55
      %p62 = scmp.eq.s32.totalorder %s24, 1
      %p63 = por %p61, %p62
      %p64 = scmp.ne.s32.totalorder %s55, %s56
      %p65 = scmp.eq.s32.totalorder %s24, 0
      %p66 = por %p64, %p65
      %p67 = scmp.ne.s32.totalorder %s55, %s56
      %p68 = scmp.eq.s32.totalorder %s25, 1
      %p69 = por %p67, %p68
      %p71 = scmp.ne.s32.totalorder %s56, %s70
      %p72 = scmp.eq.s32.totalorder %s25, 0
      %p73 = por %p71, %p72
      %s75 = sadd.s32 %s74, 1
      %p78 = scmp.eq.s32.totalorder %s19, 1
      %p79 = scmp.ne.s32.totalorder %s74, %s76
      %p80 = scmp.eq.s32.totalorder %s19, 0
      %p81 = por %p79, %p80
      %p82 = scmp.ne.s32.totalorder %s74, %s76
      %p83 = scmp.eq.s32.totalorder %s24, 1
      %p84 = por %p82, %p83
      %p85 = scmp.ne.s32.totalorder %s76, %s77
      %p86 = scmp.eq.s32.totalorder %s24, 0
      %p87 = por %p85, %p86
      %p88 = scmp.ne.s32.totalorder %s76, %s77
      %p89 = scmp.eq.s32.totalorder %s25, 1
      %p90 = por %p88, %p89
      %p92 = scmp.ne.s32.totalorder %s77, %s91
      %p93 = scmp.eq.s32.totalorder %s25, 0
      %p94 = por %p92, %p93
      %s96 = sadd.s32 %s95, 1
      %p99 = scmp.eq.s32.totalorder %s19, 1
      %p100 = scmp.ne.s32.totalorder %s95, %s97
      %p101 = scmp.eq.s32.totalorder %s19, 0
      %p102 = por %p100, %p101
      %p103 = scmp.ne.s32.totalorder %s95, %s97
      %p104 = scmp.eq.s32.totalorder %s24, 1
      %p105 = por %p103, %p104
      %p106 = scmp.ne.s32.totalorder %s97, %s98
      %p107 = scmp.eq.s32.totalorder %s24, 0
      %p108 = por %p106, %p107
      %p109 = scmp.ne.s32.totalorder %s97, %s98
      %p110 = scmp.eq.s32.totalorder %s25, 1
      %p111 = por %p109, %p110
      %p113 = scmp.ne.s32.totalorder %s98, %s112
      %p114 = scmp.eq.s32.totalorder %s25, 0
      %p115 = por %p113, %p114
      %s117 = sadd.s32 %s116, 1
      %p120 = scmp.eq.s32.totalorder %s19, 1
      %p121 = scmp.ne.s32.totalorder %s116, %s118
      %p122 = scmp.eq.s32.totalorder %s19, 0
      %p123 = por %p121, %p122
      %p124 = scmp.ne.s32.totalorder %s116, %s118
      %p125 = scmp.eq.s32.totalorder %s24, 1
      %p126 = por %p124, %p125
      %p127 = scmp.ne.s32.totalorder %s118, %s119
      %p128 = scmp.eq.s32.totalorder %s24, 0
      %p129 = por %p127, %p128
      %p130 = scmp.ne.s32.totalorder %s118, %s119
      %p131 = scmp.eq.s32.totalorder %s25, 1
      %p132 = por %p130, %p131
      %p134 = scmp.ne.s32.totalorder %s119, %s133
      %p135 = scmp.eq.s32.totalorder %s25, 0
      %p136 = por %p134, %p135
      %s137 = ssub.s32 %s19, %s26
      %p138 = scmp.eq.s32.totalorder %s137, 0
      %s140 = sadd.s32 %s139, 1
      %s141 = scalar_select %p138, %s139, %s140
      %p144 = pneg %p138
      %p145 = scmp.eq.s32.totalorder %s19, 1
      %p146 = por %p144, %p145
      %p147 = scmp.ne.s32.totalorder %s139, %s142
      %p148 = scmp.eq.s32.totalorder %s19, 0
      %p149 = por %p147, %p148
      %p150 = scmp.ne.s32.totalorder %s139, %s142
      %p151 = scmp.eq.s32.totalorder %s24, 1
      %p152 = por %p150, %p151
      %p153 = scmp.ne.s32.totalorder %s142, %s143
      %p154 = scmp.eq.s32.totalorder %s24, 0
      %p155 = por %p153, %p154
      %p156 = scmp.ne.s32.totalorder %s142, %s143
      %p157 = scmp.eq.s32.totalorder %s25, 1
      %p158 = por %p156, %p157
      %p160 = scmp.ne.s32.totalorder %s143, %s159
      %p161 = scmp.eq.s32.totalorder %s25, 0
      %p162 = por %p160, %p161
      %p163 = scmp.le.s32.totalorder 1, %s19
      %p164 = scmp.lt.s32.totalorder %s19, 3
      %p165 = pnand %p163, %p164
      %p166 = pneg %p165
      // Predicated region
      $region9: #{tpu_custom_call.1} parent=5 // pred_check
        _
      $region10: #{tpu_custom_call.1} parent=5 // pred_check_branch
        %168 = sbr.rel (%p165) target = $region12
      $region11: #{tpu_custom_call.1} parent=5 // pred_region
        %s169 = ssub.s32 %s19, 1
        // Predicated region
        $region13: #{tpu_custom_call.1} parent=11 // pred_check
          %p170 = pneg %p66
        $region14: #{tpu_custom_call.1} parent=11 // pred_check_branch
          %172 = sbr.rel (%p170) target = $region16
        $region15: #{tpu_custom_call.1} parent=11 // pred_region
          %174 = vsyncadd [#allocation6], 0
          %s175 = sshll.u32 %s1, 4
          %s176 = int_to_ptr.hbm [resolvable:$true] %s175
          %s177 = sshll.u32 [#allocation5], 4
          %s178 = int_to_ptr.vmem [resolvable:$true] %s177
          %183 = dma.hbm_to_vmem [thread:$0]  %s176, 3072, %s178, [#allocation6], 192, 192, 12
        $region16: #{tpu_custom_call.1} parent=11 // pred_fallthru
          _
        // Predicated region
        $region17: #{tpu_custom_call.1} parent=11 // pred_check
          %p184 = pneg %p87
        $region18: #{tpu_custom_call.1} parent=11 // pred_check_branch
          %186 = sbr.rel (%p184) target = $region20
        $region19: #{tpu_custom_call.1} parent=11 // pred_region
          %188 = vsyncadd [#allocation6], 0
          %s190 = sshll.u32 %s2, 4
          %s191 = int_to_ptr.hbm [resolvable:$true] %s190
          %s192 = sshll.u32 [#allocation7], 4
          %s193 = int_to_ptr.vmem [resolvable:$true] %s192
          %195 = dma.hbm_to_vmem [thread:$0]  %s191, 48, %s193, [#allocation6]
        $region20: #{tpu_custom_call.1} parent=11 // pred_fallthru
          _
        // Predicated region
        $region21: #{tpu_custom_call.1} parent=11 // pred_check
          %p196 = pneg %p108
        $region22: #{tpu_custom_call.1} parent=11 // pred_check_branch
          %198 = sbr.rel (%p196) target = $region24
        $region23: #{tpu_custom_call.1} parent=11 // pred_region
          %200 = vsyncadd [#allocation9], 0
          %s201 = sshll.u32 %s3, 4
          %s202 = int_to_ptr.hbm [resolvable:$true] %s201
          %s203 = sshll.u32 [#allocation8], 4
          %s204 = int_to_ptr.vmem [resolvable:$true] %s203
          %209 = dma.hbm_to_vmem [thread:$0]  %s202, 256, %s204, [#allocation9], 64, 64, 4
        $region24: #{tpu_custom_call.1} parent=11 // pred_fallthru
          _
        // Predicated region
        $region25: #{tpu_custom_call.1} parent=11 // pred_check
          %p210 = pneg %p129
        $region26: #{tpu_custom_call.1} parent=11 // pred_check_branch
          %212 = sbr.rel (%p210) target = $region28
        $region27: #{tpu_custom_call.1} parent=11 // pred_region
          _
        $region28: #{tpu_custom_call.1} parent=11 // pred_fallthru
          _
      $region12: #{tpu_custom_call.1} parent=5 // pred_fallthru
        _
      %p213 = scmp.lt.s32.totalorder %s19, 2
      // Predicated region
      $region29: #{tpu_custom_call.1} parent=5 // pred_check
        %p214 = pneg %p213
      $region30: #{tpu_custom_call.1} parent=5 // pred_check_branch
        %216 = sbr.rel (%p214) target = $region32
      $region31: #{tpu_custom_call.1} parent=5 // pred_region
        // Predicated region
        $region33: #{tpu_custom_call.1} parent=31 // pred_check
          %p217 = pneg %p39
        $region34: #{tpu_custom_call.1} parent=31 // pred_check_branch
          %219 = sbr.rel (%p217) target = $region36
        $region35: #{tpu_custom_call.1} parent=31 // pred_region
          %s220 = sand.u32 %s29, 1
          %s221 = scalar_lea.sflag [#allocation3], %s220
          %s222 = sand.u32 %s29, 1
          %s223 = smul.addr %s222, 8
          %s224 = scalar_lea.vmem [#allocation2], %s223
          %226 = vsyncadd %s221, 0
          %s227 = smul.addr %s19, 8
          %s228 = scalar_lea.hbm %s0, %s227
          %s230 = sshll.u32 %s228, 4
          %s231 = int_to_ptr.hbm [resolvable:$true] %s230
          %s232 = sshll.u32 %s224, 4
          %s233 = int_to_ptr.vmem [resolvable:$true] %s232
          %235 = dma.hbm_to_vmem [thread:$0]  %s231, 128, %s233, %s221
        $region36: #{tpu_custom_call.1} parent=31 // pred_fallthru
          _
      $region32: #{tpu_custom_call.1} parent=5 // pred_fallthru
        _
      %p236 = scmp.le.s32.totalorder 1, %s19
      %p237 = scmp.lt.s32.totalorder %s19, 3
      %p238 = pnand %p236, %p237
      %p239 = pneg %p238
      // Predicated region
      $region37: #{tpu_custom_call.1} parent=5 // pred_check
        _
      $region38: #{tpu_custom_call.1} parent=5 // pred_check_branch
        %241 = sbr.rel (%p238) target = $region40
      $region39: #{tpu_custom_call.1} parent=5 // pred_region
        %s242 = ssub.s32 %s19, 1
        %s243 = sand.u32 %s32, 1
        %s244 = scalar_lea.sflag [#allocation3], %s243
        %s245 = sand.u32 %s32, 1
        %s246 = smul.addr %s245, 8
        %s247 = scalar_lea.vmem [#allocation2], %s246
        // Predicated region
        $region41: #{tpu_custom_call.1} parent=39 // pred_check
          %p248 = pneg %p45
        $region42: #{tpu_custom_call.1} parent=39 // pred_check_branch
          %250 = sbr.rel (%p248) target = $region44
        $region43: #{tpu_custom_call.1} parent=39 // pred_region
          %252 = dma.done %s244, 128
        $region44: #{tpu_custom_call.1} parent=39 // pred_fallthru
          _
        // Predicated region
        $region45: #{tpu_custom_call.1} parent=39 // pred_check
          %p253 = pneg %p66
        $region46: #{tpu_custom_call.1} parent=39 // pred_check_branch
          %255 = sbr.rel (%p253) target = $region48
        $region47: #{tpu_custom_call.1} parent=39 // pred_region
          %257 = dma.done [#allocation6], 3072
        $region48: #{tpu_custom_call.1} parent=39 // pred_fallthru
          _
        // Predicated region
        $region49: #{tpu_custom_call.1} parent=39 // pred_check
          %p258 = pneg %p87
        $region50: #{tpu_custom_call.1} parent=39 // pred_check_branch
          %260 = sbr.rel (%p258) target = $region52
        $region51: #{tpu_custom_call.1} parent=39 // pred_region
          %262 = dma.done [#allocation6], 48
        $region52: #{tpu_custom_call.1} parent=39 // pred_fallthru
          _
        // Predicated region
        $region53: #{tpu_custom_call.1} parent=39 // pred_check
          %p263 = pneg %p108
        $region54: #{tpu_custom_call.1} parent=39 // pred_check_branch
          %265 = sbr.rel (%p263) target = $region56
        $region55: #{tpu_custom_call.1} parent=39 // pred_region
          %267 = dma.done [#allocation9], 256
        $region56: #{tpu_custom_call.1} parent=39 // pred_fallthru
          _
        %s268 = sand.u32 %s32, 1
        %s269 = scalar_lea.sflag [#allocation3], %s268
        %s270 = sand.u32 %s32, 1
        %s271 = smul.addr %s270, 8
        %s272 = scalar_lea.vmem [#allocation2], %s271
        %p273 = pneg %p45
        %p274 = pneg %p42
        %p275 = pneg %p66
        %p276 = pneg %p63
        %p277 = pneg %p87
        %p278 = pneg %p84
        %p279 = pneg %p108
        %p280 = pneg %p105
        %p281 = pneg %p129
        %p282 = pneg %p126
        %p283 = pneg %p155
        %p284 = pneg %p152
        %s285 = sand.u32 %s142, 1
        %s286 = scalar_lea.sflag [#allocation4], %s285
        %s287 = sand.u32 %s142, 1
        %s288 = smul.addr %s287, 8
        %s289 = scalar_lea.vmem [#allocation10], %s288
        %v291 = vld [vmem:[%s247] sm:$0xff]
        %v292 = vpack.c.bf16 %v291, %v291
        %v293 = vld [vmem:[#allocation5] sm:$0xff]
        %v294 = vld [vmem:[#allocation5 + $0x8] sm:$0xf]
        %v295 = vld [vmem:[#allocation5 + $0xc] sm:$0xff]
        %v296 = vld [vmem:[#allocation5 + $0x14] sm:$0xf]
        %v297 = vld [vmem:[#allocation5 + $0x18] sm:$0xff]
        %v298 = vld [vmem:[#allocation5 + $0x20] sm:$0xf]
        %v299 = vld [vmem:[#allocation5 + $0x24] sm:$0xff]
        %v300 = vld [vmem:[#allocation5 + $0x2c] sm:$0xf]
        %v301 = vld [vmem:[#allocation5 + $0x30] sm:$0xff]
        %v302 = vld [vmem:[#allocation5 + $0x38] sm:$0xf]
        %v303 = vld [vmem:[#allocation5 + $0x3c] sm:$0xff]
        %v304 = vld [vmem:[#allocation5 + $0x44] sm:$0xf]
        %v305 = vld [vmem:[#allocation5 + $0x48] sm:$0xff]
        %v306 = vld [vmem:[#allocation5 + $0x50] sm:$0xf]
        %v307 = vld [vmem:[#allocation5 + $0x54] sm:$0xff]
        %v308 = vld [vmem:[#allocation5 + $0x5c] sm:$0xf]
        %v309 = vld [vmem:[#allocation5 + $0x60] sm:$0xff]
        %v310 = vld [vmem:[#allocation5 + $0x68] sm:$0xf]
        %v311 = vld [vmem:[#allocation5 + $0x6c] sm:$0xff]
        %v312 = vld [vmem:[#allocation5 + $0x74] sm:$0xf]
        %v313 = vld [vmem:[#allocation5 + $0x78] sm:$0xff]
        %v314 = vld [vmem:[#allocation5 + $0x80] sm:$0xf]
        %v315 = vld [vmem:[#allocation5 + $0x84] sm:$0xff]
        %v316 = vld [vmem:[#allocation5 + $0x8c] sm:$0xf]
        %v317 = vld [vmem:[#allocation5 + $0x90] sm:$0xff]
        %v318 = vld [vmem:[#allocation5 + $0x98] sm:$0xf]
        %v319 = vld [vmem:[#allocation5 + $0x9c] sm:$0xff]
        %v320 = vld [vmem:[#allocation5 + $0xa4] sm:$0xf]
        %v321 = vld [vmem:[#allocation5 + $0xa8] sm:$0xff]
        %v322 = vld [vmem:[#allocation5 + $0xb0] sm:$0xf]
        %v323 = vld [vmem:[#allocation5 + $0xb4] sm:$0xff]
        %v324 = vld [vmem:[#allocation5 + $0xbc] sm:$0xf]
        %v325 = vld [vmem:[#allocation7] sm:$0x7]
        %v327 = vperm.slane %v325, 0
        %v328 = vperm.slane %v325, 1
        %v329 = vperm.slane %v325, 2
        %v365 = vunpack.c.l.b16 %v293
        %v366 = vunpack.c.h.b16 %v293
        %v367 = vunpack.c.l.b16 %v294
        %v368 = vunpack.c.l.b16 %v295
        %v369 = vunpack.c.h.b16 %v295
        %v370 = vunpack.c.l.b16 %v296
        %v371 = vunpack.c.l.b16 %v297
        %v372 = vunpack.c.h.b16 %v297
        %v373 = vunpack.c.l.b16 %v298
        %v374 = vunpack.c.l.b16 %v299
        %v375 = vunpack.c.h.b16 %v299
        %v376 = vunpack.c.l.b16 %v300
        %v377 = vunpack.c.l.b16 %v301
        %v378 = vunpack.c.h.b16 %v301
        %v379 = vunpack.c.l.b16 %v302
        %v380 = vunpack.c.l.b16 %v303
        %v381 = vunpack.c.h.b16 %v303
        %v382 = vunpack.c.l.b16 %v304
        %v383 = vunpack.c.l.b16 %v305
        %v384 = vunpack.c.h.b16 %v305
        %v385 = vunpack.c.l.b16 %v306
        %v386 = vunpack.c.l.b16 %v307
        %v387 = vunpack.c.h.b16 %v307
        %v388 = vunpack.c.l.b16 %v308
        %v389 = vunpack.c.l.b16 %v309
        %v390 = vunpack.c.h.b16 %v309
        %v391 = vunpack.c.l.b16 %v310
        %v392 = vunpack.c.l.b16 %v311
        %v393 = vunpack.c.h.b16 %v311
        %v394 = vunpack.c.l.b16 %v312
        %v395 = vunpack.c.l.b16 %v313
        %v396 = vunpack.c.h.b16 %v313
        %v397 = vunpack.c.l.b16 %v314
        %v398 = vunpack.c.l.b16 %v315
        %v399 = vunpack.c.h.b16 %v315
        %v400 = vunpack.c.l.b16 %v316
        %v401 = vunpack.c.l.b16 %v317
        %v402 = vunpack.c.h.b16 %v317
        %v403 = vunpack.c.l.b16 %v318
        %v404 = vunpack.c.l.b16 %v319
        %v405 = vunpack.c.h.b16 %v319
        %v406 = vunpack.c.l.b16 %v320
        %v407 = vunpack.c.l.b16 %v321
        %v408 = vunpack.c.h.b16 %v321
        %v409 = vunpack.c.l.b16 %v322
        %v410 = vunpack.c.l.b16 %v323
        %v411 = vunpack.c.h.b16 %v323
        %v412 = vunpack.c.l.b16 %v324
        %v413 = vpack.c.b16 %v368, %v365
        %v414 = vpack.c.b16 %v369, %v366
        %v415 = vpack.c.b16 %v370, %v367
        %v416 = vpack.c.b16 %v374, %v371
        %v417 = vpack.c.b16 %v375, %v372
        %v418 = vpack.c.b16 %v376, %v373
        %v419 = vpack.c.b16 %v380, %v377
        %v420 = vpack.c.b16 %v381, %v378
        %v421 = vpack.c.b16 %v382, %v379
        %v422 = vpack.c.b16 %v386, %v383
        %v423 = vpack.c.b16 %v387, %v384
        %v424 = vpack.c.b16 %v388, %v385
        %v425 = vpack.c.b16 %v392, %v389
        %v426 = vpack.c.b16 %v393, %v390
        %v427 = vpack.c.b16 %v394, %v391
        %v428 = vpack.c.b16 %v398, %v395
        %v429 = vpack.c.b16 %v399, %v396
        %v430 = vpack.c.b16 %v400, %v397
        %v431 = vpack.c.b16 %v404, %v401
        %v432 = vpack.c.b16 %v405, %v402
        %v433 = vpack.c.b16 %v406, %v403
        %v434 = vpack.c.b16 %v410, %v407
        %v435 = vpack.c.b16 %v411, %v408
        %v436 = vpack.c.b16 %v412, %v409
        %461 = vmatpush.bf16.msra.mxu0 %v434
        %462 = vmatpush.bf16.msra.mxu0 %v431
        %463 = vmatpush.bf16.msra.mxu0 %v428
        %464 = vmatpush.bf16.msra.mxu0 %v425
        %465 = vmatpush.bf16.msra.mxu0 %v422
        %466 = vmatpush.bf16.msra.mxu0 %v419
        %467 = vmatpush.bf16.msra.mxu0 %v416
        %468 = vmatpush.bf16.msra.mxu0 %v413
        %469 = vmatmul.bf16.gmra.mxu0 %v292
        %v470 = vpop.f32.mrf.mxu0
        %v471 = vadd.f32 %v327, %v470
        %v472 = vpop.f32.mrf.mxu0
        %473 = vdwg.mxu0
        %474 = vmatpush.bf16.msra.mxu0 %v435
        %475 = vmatpush.bf16.msra.mxu0 %v432
        %476 = vmatpush.bf16.msra.mxu0 %v429
        %477 = vmatpush.bf16.msra.mxu0 %v426
        %478 = vmatpush.bf16.msra.mxu0 %v423
        %479 = vmatpush.bf16.msra.mxu0 %v420
        %480 = vmatpush.bf16.msra.mxu0 %v417
        %481 = vmatpush.bf16.msra.mxu0 %v414
        %482 = vmatmul.bf16.gmra.mxu0 %v292
        %v483 = vpop.f32.mrf.mxu0
        %v484 = vadd.f32 %v328, %v483
        %v485 = vpop.f32.mrf.mxu0
        %486 = vdwg.mxu0
        %487 = vmatpush.bf16.msra.mxu0 %v436
        %488 = vmatpush.bf16.msra.mxu0 %v433
        %489 = vmatpush.bf16.msra.mxu0 %v430
        %490 = vmatpush.bf16.msra.mxu0 %v427
        %491 = vmatpush.bf16.msra.mxu0 %v424
        %492 = vmatpush.bf16.msra.mxu0 %v421
        %493 = vmatpush.bf16.msra.mxu0 %v418
        %494 = vmatpush.bf16.msra.mxu0 %v415
        %495 = vmatmul.bf16.gmra.mxu0 %v292
        %v496 = vpop.f32.mrf.mxu0
        %v497 = vadd.f32 %v329, %v496
        %v498 = vpop.f32.mrf.mxu0
        %499 = vdwg.mxu0
        %v500 = vmul.f32 %v471, 0.35355338
        %v501 = vpack.c.bf16 %v500, %v500
        %v502 = vpack.c.bf16 %v484, %v484
        %v503 = vpack.c.bf16 %v497, %v497
        %v504 = vlaneseq
        %v505 = vshrl.u32 %v504, 7
        %v506 = vlaneseq
        %v507 = vand.u32 %v506, 127
        %vm508 = vcmp.gt.s32.totalorder %v507, %v505
        %v509 = vsel %vm508, -1e+30, 0.0
        %v510 = vld [vmem:[#allocation8] sm:$0xf]
        %v511 = vld [vmem:[#allocation8 + $0x4] sm:$0xf]
        %v512 = vld [vmem:[#allocation8 + $0x8] sm:$0xf]
        %v513 = vld [vmem:[#allocation8 + $0xc] sm:$0xf]
        %vm514 = vcmask 64512
        %v516 = vsel %vm514, %v501, 0
        %v519 = vsel %vm514, %v502, 0
        %521 = vmatpush.bf16.xpose.msra.mxu0 0
        %522 = vmatpush.bf16.xpose.msra.mxu0 0
        %523 = vmatpush.bf16.xpose.msra.mxu0 0
        %524 = vmatpush.bf16.xpose.msra.mxu0 0
        %525 = vmatpush.bf16.xpose.msra.mxu0 0
        %526 = vmatpush.bf16.xpose.msra.mxu0 0
        %527 = vmatpush.bf16.xpose.msra.mxu0 0
        %528 = vmatpush.bf16.xpose.msra.mxu0 %v519
        %529 = vmatmul.bf16.gmra.mxu0 %v516
        %v530 = vpop.f32.mrf.mxu0
        %v531 = vadd.f32 %v509, %v530
        %v532 = vpop.f32.mrf.mxu0
        %533 = vdwg.mxu0
        %v534 = vsel %vm514, %v531, -inf
        %535 = vmax.xlane.f32.xlu0 %v534
        %v536 = vpop.xlane.xlu0 %535
        %v537 = vsub.f32 %v531, %v536
        %v538 = vmul.f32 %v537, 1.442695
        %v539 = vpow.pop %v538
        %v540 = vsel %vm514, %v539, 0.0
        %541 = vadd.xlane.f32.xlu0 %v540
        %v542 = vpop.xlane.xlu0 %541
        %v543 = vrcp.pop %v542
        %v544 = vmul.f32 %v542, %v543
        %v545 = vsub.f32 1.0, %v544
        %v546 = vmul.f32 %v543, %v545
        %v547 = vadd.f32 %v543, %v546
        %vm548 = vweird.f32 %v542
        %vm549 = vweird.f32 %v543
        %vm550 = vmor %vm548, %vm549
        %v551 = vsel %vm550, %v543, %v547
        %v552 = vand.u32 2147483647, %v542
        %vm553 = vcmp.eq.f32.partialorder %v552, 8.507059e+37
        %v554 = vand.u32 %v542, 2147483648
        %v555 = vor.u32 1.1754944e-38, %v554
        %v556 = vsel %vm553, %v555, %v551
        %v557 = vmul.f32 %v539, %v556
        %v558 = vpack.c.bf16 %v557, %v557
        %v560 = vsel %vm514, %v558, 0
        %vm562 = vcmask 1043456
        %v564 = vsel %vm562, %v503, 0
        %566 = vmatpush.bf16.msra.mxu0 0
        %567 = vmatpush.bf16.msra.mxu0 0
        %568 = vmatpush.bf16.msra.mxu0 0
        %569 = vmatpush.bf16.msra.mxu0 0
        %570 = vmatpush.bf16.msra.mxu0 0
        %571 = vmatpush.bf16.msra.mxu0 0
        %572 = vmatpush.bf16.msra.mxu0 0
        %573 = vmatpush.bf16.msra.mxu0 %v564
        %574 = vmatmul.bf16.gmra.mxu0 %v560
        %v575 = vpop.f32.mrf.mxu0
        %v576 = vadd.f32 0.0, %v575
        %v577 = vpop.f32.mrf.mxu0
        %578 = vdwg.mxu0
        %v579 = vpack.c.bf16 %v576, %v576
        %v581 = vunpack.c.l.b16 %v501
        %v582 = vpack.c.b16 %v581, %v581
        %583 = vrot.lane.b32.xlu0 %v582, 120
        %v584 = vpop.permute.xlu0 %583
        %v586 = vunpack.c.l.b16 %v502
        %v587 = vpack.c.b16 %v586, %v586
        %588 = vrot.lane.b32.xlu0 %v587, 120
        %v589 = vpop.permute.xlu0 %588
        %v591 = vsel %vm514, %v584, 0
        %v594 = vsel %vm514, %v589, 0
        %596 = vmatpush.bf16.xpose.msra.mxu0 0
        %597 = vmatpush.bf16.xpose.msra.mxu0 0
        %598 = vmatpush.bf16.xpose.msra.mxu0 0
        %599 = vmatpush.bf16.xpose.msra.mxu0 0
        %600 = vmatpush.bf16.xpose.msra.mxu0 0
        %601 = vmatpush.bf16.xpose.msra.mxu0 0
        %602 = vmatpush.bf16.xpose.msra.mxu0 0
        %603 = vmatpush.bf16.xpose.msra.mxu0 %v594
        %604 = vmatmul.bf16.gmra.mxu0 %v591
        %v605 = vpop.f32.mrf.mxu0
        %v606 = vadd.f32 %v509, %v605
        %v607 = vpop.f32.mrf.mxu0
        %608 = vdwg.mxu0
        %v609 = vsel %vm514, %v606, -inf
        %610 = vmax.xlane.f32.xlu0 %v609
        %v611 = vpop.xlane.xlu0 %610
        %v612 = vsub.f32 %v606, %v611
        %v613 = vmul.f32 %v612, 1.442695
        %v614 = vpow.pop %v613
        %v615 = vsel %vm514, %v614, 0.0
        %616 = vadd.xlane.f32.xlu0 %v615
        %v617 = vpop.xlane.xlu0 %616
        %v618 = vrcp.pop %v617
        %v619 = vmul.f32 %v617, %v618
        %v620 = vsub.f32 1.0, %v619
        %v621 = vmul.f32 %v618, %v620
        %v622 = vadd.f32 %v618, %v621
        %vm623 = vweird.f32 %v617
        %vm624 = vweird.f32 %v618
        %vm625 = vmor %vm623, %vm624
        %v626 = vsel %vm625, %v618, %v622
        %v627 = vand.u32 2147483647, %v617
        %vm628 = vcmp.eq.f32.partialorder %v627, 8.507059e+37
        %v629 = vand.u32 %v617, 2147483648
        %v630 = vor.u32 1.1754944e-38, %v629
        %v631 = vsel %vm628, %v630, %v626
        %v632 = vmul.f32 %v614, %v631
        %v633 = vpack.c.bf16 %v632, %v632
        %v635 = vunpack.c.l.b16 %v503
        %v636 = vpack.c.b16 %v635, %v635
        %637 = vrot.lane.b32.xlu0 %v636, 120
        %v638 = vpop.permute.xlu0 %637
        %v640 = vsel %vm514, %v633, 0
        %v643 = vsel %vm562, %v638, 0
        %645 = vmatpush.bf16.msra.mxu0 0
        %646 = vmatpush.bf16.msra.mxu0 0
        %647 = vmatpush.bf16.msra.mxu0 0
        %648 = vmatpush.bf16.msra.mxu0 0
        %649 = vmatpush.bf16.msra.mxu0 0
        %650 = vmatpush.bf16.msra.mxu0 0
        %651 = vmatpush.bf16.msra.mxu0 0
        %652 = vmatpush.bf16.msra.mxu0 %v643
        %653 = vmatmul.bf16.gmra.mxu0 %v640
        %v654 = vpop.f32.mrf.mxu0
        %v655 = vadd.f32 0.0, %v654
        %v656 = vpop.f32.mrf.mxu0
        %657 = vdwg.mxu0
        %v658 = vpack.c.bf16 %v655, %v655
        %v660 = vsel %vm514, %v658, 0
        %v663 = vsel %vm562, %v511, 0
        %665 = vmatpush.bf16.msra.mxu0 0
        %666 = vmatpush.bf16.msra.mxu0 0
        %667 = vmatpush.bf16.msra.mxu0 0
        %668 = vmatpush.bf16.msra.mxu0 0
        %669 = vmatpush.bf16.msra.mxu0 0
        %670 = vmatpush.bf16.msra.mxu0 0
        %671 = vmatpush.bf16.msra.mxu0 0
        %672 = vmatpush.bf16.msra.mxu0 %v663
        %673 = vmatmul.bf16.gmra.mxu0 %v660
        %v674 = vpop.f32.mrf.mxu0
        %v675 = vadd.f32 0.0, %v674
        %v676 = vpop.f32.mrf.mxu0
        %677 = vdwg.mxu0
        %v679 = vsel %vm514, %v579, 0
        %v682 = vsel %vm562, %v510, 0
        %684 = vmatpush.bf16.msra.mxu0 0
        %685 = vmatpush.bf16.msra.mxu0 0
        %686 = vmatpush.bf16.msra.mxu0 0
        %687 = vmatpush.bf16.msra.mxu0 0
        %688 = vmatpush.bf16.msra.mxu0 0
        %689 = vmatpush.bf16.msra.mxu0 0
        %690 = vmatpush.bf16.msra.mxu0 0
        %691 = vmatpush.bf16.msra.mxu0 %v682
        %692 = vmatmul.bf16.gmra.mxu0 %v679
        %v693 = vpop.f32.mrf.mxu0
        %v694 = vadd.f32 %v675, %v693
        %v695 = vpop.f32.mrf.mxu0
        %696 = vdwg.mxu0
        %697 = vrot.lane.b32.xlu0 %v582, 112
        %v698 = vpop.permute.xlu0 %697
        %699 = vrot.lane.b32.xlu0 %v587, 112
        %v700 = vpop.permute.xlu0 %699
        %v702 = vsel %vm514, %v698, 0
        %v705 = vsel %vm514, %v700, 0
        %707 = vmatpush.bf16.xpose.msra.mxu0 0
        %708 = vmatpush.bf16.xpose.msra.mxu0 0
        %709 = vmatpush.bf16.xpose.msra.mxu0 0
        %710 = vmatpush.bf16.xpose.msra.mxu0 0
        %711 = vmatpush.bf16.xpose.msra.mxu0 0
        %712 = vmatpush.bf16.xpose.msra.mxu0 0
        %713 = vmatpush.bf16.xpose.msra.mxu0 0
        %714 = vmatpush.bf16.xpose.msra.mxu0 %v705
        %715 = vmatmul.bf16.gmra.mxu0 %v702
        %v716 = vpop.f32.mrf.mxu0
        %v717 = vadd.f32 %v509, %v716
        %v718 = vpop.f32.mrf.mxu0
        %719 = vdwg.mxu0
        %v720 = vsel %vm514, %v717, -inf
        %721 = vmax.xlane.f32.xlu0 %v720
        %v722 = vpop.xlane.xlu0 %721
        %v723 = vsub.f32 %v717, %v722
        %v724 = vmul.f32 %v723, 1.442695
        %v725 = vpow.pop %v724
        %v726 = vsel %vm514, %v725, 0.0
        %727 = vadd.xlane.f32.xlu0 %v726
        %v728 = vpop.xlane.xlu0 %727
        %v729 = vrcp.pop %v728
        %v730 = vmul.f32 %v728, %v729
        %v731 = vsub.f32 1.0, %v730
        %v732 = vmul.f32 %v729, %v731
        %v733 = vadd.f32 %v729, %v732
        %vm734 = vweird.f32 %v728
        %vm735 = vweird.f32 %v729
        %vm736 = vmor %vm734, %vm735
        %v737 = vsel %vm736, %v729, %v733
        %v738 = vand.u32 2147483647, %v728
        %vm739 = vcmp.eq.f32.partialorder %v738, 8.507059e+37
        %v740 = vand.u32 %v728, 2147483648
        %v741 = vor.u32 1.1754944e-38, %v740
        %v742 = vsel %vm739, %v741, %v737
        %v743 = vmul.f32 %v725, %v742
        %v744 = vpack.c.bf16 %v743, %v743
        %745 = vrot.lane.b32.xlu0 %v636, 112
        %v746 = vpop.permute.xlu0 %745
        %v748 = vsel %vm514, %v744, 0
        %v751 = vsel %vm562, %v746, 0
        %753 = vmatpush.bf16.msra.mxu0 0
        %754 = vmatpush.bf16.msra.mxu0 0
        %755 = vmatpush.bf16.msra.mxu0 0
        %756 = vmatpush.bf16.msra.mxu0 0
        %757 = vmatpush.bf16.msra.mxu0 0
        %758 = vmatpush.bf16.msra.mxu0 0
        %759 = vmatpush.bf16.msra.mxu0 0
        %760 = vmatpush.bf16.msra.mxu0 %v751
        %761 = vmatmul.bf16.gmra.mxu0 %v748
        %v762 = vpop.f32.mrf.mxu0
        %v763 = vadd.f32 0.0, %v762
        %v764 = vpop.f32.mrf.mxu0
        %765 = vdwg.mxu0
        %v766 = vpack.c.bf16 %v763, %v763
        %v768 = vsel %vm514, %v766, 0
        %v771 = vsel %vm562, %v512, 0
        %773 = vmatpush.bf16.msra.mxu0 0
        %774 = vmatpush.bf16.msra.mxu0 0
        %775 = vmatpush.bf16.msra.mxu0 0
        %776 = vmatpush.bf16.msra.mxu0 0
        %777 = vmatpush.bf16.msra.mxu0 0
        %778 = vmatpush.bf16.msra.mxu0 0
        %779 = vmatpush.bf16.msra.mxu0 0
        %780 = vmatpush.bf16.msra.mxu0 %v771
        %781 = vmatmul.bf16.gmra.mxu0 %v768
        %v782 = vpop.f32.mrf.mxu0
        %v783 = vadd.f32 0.0, %v782
        %v784 = vpop.f32.mrf.mxu0
        %785 = vdwg.mxu0
        %v786 = vadd.f32 %v694, %v783
        %787 = vrot.lane.b32.xlu0 %v582, 104
        %v788 = vpop.permute.xlu0 %787
        %789 = vrot.lane.b32.xlu0 %v587, 104
        %v790 = vpop.permute.xlu0 %789
        %v792 = vsel %vm514, %v788, 0
        %v795 = vsel %vm514, %v790, 0
        %797 = vmatpush.bf16.xpose.msra.mxu0 0
        %798 = vmatpush.bf16.xpose.msra.mxu0 0
        %799 = vmatpush.bf16.xpose.msra.mxu0 0
        %800 = vmatpush.bf16.xpose.msra.mxu0 0
        %801 = vmatpush.bf16.xpose.msra.mxu0 0
        %802 = vmatpush.bf16.xpose.msra.mxu0 0
        %803 = vmatpush.bf16.xpose.msra.mxu0 0
        %804 = vmatpush.bf16.xpose.msra.mxu0 %v795
        %805 = vmatmul.bf16.gmra.mxu0 %v792
        %v806 = vpop.f32.mrf.mxu0
        %v807 = vadd.f32 %v509, %v806
        %v808 = vpop.f32.mrf.mxu0
        %809 = vdwg.mxu0
        %v810 = vsel %vm514, %v807, -inf
        %811 = vmax.xlane.f32.xlu0 %v810
        %v812 = vpop.xlane.xlu0 %811
        %v813 = vsub.f32 %v807, %v812
        %v814 = vmul.f32 %v813, 1.442695
        %v815 = vpow.pop %v814
        %v816 = vsel %vm514, %v815, 0.0
        %817 = vadd.xlane.f32.xlu0 %v816
        %v818 = vpop.xlane.xlu0 %817
        %v819 = vrcp.pop %v818
        %v820 = vmul.f32 %v818, %v819
        %v821 = vsub.f32 1.0, %v820
        %v822 = vmul.f32 %v819, %v821
        %v823 = vadd.f32 %v819, %v822
        %vm824 = vweird.f32 %v818
        %vm825 = vweird.f32 %v819
        %vm826 = vmor %vm824, %vm825
        %v827 = vsel %vm826, %v819, %v823
        %v828 = vand.u32 2147483647, %v818
        %vm829 = vcmp.eq.f32.partialorder %v828, 8.507059e+37
        %v830 = vand.u32 %v818, 2147483648
        %v831 = vor.u32 1.1754944e-38, %v830
        %v832 = vsel %vm829, %v831, %v827
        %v833 = vmul.f32 %v815, %v832
        %v834 = vpack.c.bf16 %v833, %v833
        %835 = vrot.lane.b32.xlu0 %v636, 104
        %v836 = vpop.permute.xlu0 %835
        %v838 = vsel %vm514, %v834, 0
        %v841 = vsel %vm562, %v836, 0
        %843 = vmatpush.bf16.msra.mxu0 0
        %844 = vmatpush.bf16.msra.mxu0 0
        %845 = vmatpush.bf16.msra.mxu0 0
        %846 = vmatpush.bf16.msra.mxu0 0
        %847 = vmatpush.bf16.msra.mxu0 0
        %848 = vmatpush.bf16.msra.mxu0 0
        %849 = vmatpush.bf16.msra.mxu0 0
        %850 = vmatpush.bf16.msra.mxu0 %v841
        %851 = vmatmul.bf16.gmra.mxu0 %v838
        %v852 = vpop.f32.mrf.mxu0
        %v853 = vadd.f32 0.0, %v852
        %v854 = vpop.f32.mrf.mxu0
        %855 = vdwg.mxu0
        %v856 = vpack.c.bf16 %v853, %v853
        %v858 = vsel %vm514, %v856, 0
        %v861 = vsel %vm562, %v513, 0
        %863 = vmatpush.bf16.msra.mxu0 0
        %864 = vmatpush.bf16.msra.mxu0 0
        %865 = vmatpush.bf16.msra.mxu0 0
        %866 = vmatpush.bf16.msra.mxu0 0
        %867 = vmatpush.bf16.msra.mxu0 0
        %868 = vmatpush.bf16.msra.mxu0 0
        %869 = vmatpush.bf16.msra.mxu0 0
        %870 = vmatpush.bf16.msra.mxu0 %v861
        %871 = vmatmul.bf16.gmra.mxu0 %v858
        %v872 = vpop.f32.mrf.mxu0
        %v873 = vadd.f32 0.0, %v872
        %v874 = vpop.f32.mrf.mxu0
        %875 = vdwg.mxu0
        %v876 = vadd.f32 %v786, %v873
        %v877 = vadd.f32 %v291, %v876
        %v878 = vld [vmem:[%s4] sm:$0x1]
        %v880 = vperm.slane %v878, 0
        %v882 = vadd.f32 %v877, %v880
        %883 = vst [vmem:[%s289] sm:$0xff] %v882
        %s884 = sand.u32 %s142, 1
        %s885 = scalar_lea.sflag [#allocation4], %s884
        %s886 = sand.u32 %s142, 1
        %s887 = smul.addr %s886, 8
        %s888 = scalar_lea.vmem [#allocation10], %s887
        // Predicated region
        $region57: #{tpu_custom_call.1} parent=39 // pred_check
          %p889 = pneg %p152
        $region58: #{tpu_custom_call.1} parent=39 // pred_check_branch
          %891 = sbr.rel (%p889) target = $region60
        $region59: #{tpu_custom_call.1} parent=39 // pred_region
          %893 = vsyncadd %s885, 0
          %s894 = smul.addr %s24, 8
          %s895 = scalar_lea.hbm %s5, %s894
          %s897 = sshll.u32 %s888, 4
          %s898 = int_to_ptr.vmem [resolvable:$true] %s897
          %s899 = sshll.u32 %s895, 4
          %s900 = int_to_ptr.hbm [resolvable:$true] %s899
          %902 = dma.vmem_to_hbm [thread:$0]  %s898, 128, %s900, %s885
        $region60: #{tpu_custom_call.1} parent=39 // pred_fallthru
          _
      $region40: #{tpu_custom_call.1} parent=5 // pred_fallthru
        _
      %p903 = scmp.le.s32.totalorder 2, %s19
      // Predicated region
      $region61: #{tpu_custom_call.1} parent=5 // pred_check
        %p904 = pneg %p903
      $region62: #{tpu_custom_call.1} parent=5 // pred_check_branch
        %906 = sbr.rel (%p904) target = $region64
      $region63: #{tpu_custom_call.1} parent=5 // pred_region
        %s907 = ssub.s32 %s19, 2
        // Predicated region
        $region65: #{tpu_custom_call.1} parent=63 // pred_check
          %p908 = pneg %p158
        $region66: #{tpu_custom_call.1} parent=63 // pred_check_branch
          %910 = sbr.rel (%p908) target = $region68
        $region67: #{tpu_custom_call.1} parent=63 // pred_region
          %s911 = sand.u32 %s143, 1
          %s912 = scalar_lea.sflag [#allocation4], %s911
          %s913 = sand.u32 %s143, 1
          %s914 = smul.addr %s913, 8
          %s915 = scalar_lea.vmem [#allocation10], %s914
          %917 = dma.done %s912, 128
        $region68: #{tpu_custom_call.1} parent=63 // pred_fallthru
          _
      $region64: #{tpu_custom_call.1} parent=5 // pred_fallthru
        _
    $region6: #{tpu_custom_call.1} parent=1 // loop_footer
      %s23 = sadd.s32 1, %s19
    $region7: #{tpu_custom_call.1} parent=1 // loop_footer_branch
      %18 = sbr.rel target = $region3
    $region8: #{tpu_custom_call.1} parent=1 // loop_exit
      _
    %918 = vsyncpa [#allocation3], 1
    %s919 = scalar_lea.sflag [#allocation3], 1
    %920 = vsyncpa %s919, 1
    %921 = vsyncpa [#allocation6], 1
    %922 = vsyncpa [#allocation9], 1
    %923 = vsyncpa [#allocation4], 1
    %s924 = scalar_lea.sflag [#allocation4], 1
    %925 = vsyncpa %s924, 1

</llo_original>
